<compile_context>
chip_gen: v7x
topology: tpu7x:2x2x1
jax: 0.10.0
libtpu: 0.0.40
codegen_flags: <defaults>
</compile_context>

<pallas_src>
import functools
import math

import jax
import jax.numpy as jnp
from jax import lax
from jax.experimental import pallas as pl
from jax.experimental.pallas import tpu as pltpu


def _round_up(x, m):
    return -(-x // m) * m


# ----------------------------------------------------------------------------
# Pallas kernels
# ----------------------------------------------------------------------------
def _mm_bias_kernel(a_ref, b_ref, bias_ref, o_ref, acc_ref):
    @pl.when(pl.program_id(2) == 0)
    def _():
        acc_ref[...] = jnp.zeros_like(acc_ref)

    acc_ref[...] += jnp.dot(a_ref[...], b_ref[...],
                            preferred_element_type=jnp.float32)

    @pl.when(pl.program_id(2) == pl.num_programs(2) - 1)
    def _():
        o_ref[...] = (acc_ref[...] + bias_ref[...]).astype(o_ref.dtype)


@functools.lru_cache(maxsize=None)
def _mm_fn(M, K, N):
    # Tile selection: big K tiles to amortize grid-step overhead, N tiles that
    # are multiples of 256 where possible (v6e/v7x MXU geometry), M tile sized
    # to the (small) real M so no work is wasted on padding.
    tm = min(256, _round_up(M, 8))
    Mp = _round_up(M, tm)
    Kp = _round_up(K, 128)
    tk = next(c for c in (512, 384, 256, 128) if Kp % c == 0)
    Np = _round_up(N, 128)
    tn = next(c for c in (512, 384, 256, 128) if Np % c == 0)
    # Keep >= 2 parallel output blocks when possible (v7x has 2 TensorCores).
    if Mp // tm == 1 and Np // tn == 1 and tn > 128:
        for c in (256, 128):
            if Np % c == 0 and Np // c >= 2:
                tn = c
                break
    grid = (Mp // tm, Np // tn, Kp // tk)

    call = pl.pallas_call(
        _mm_bias_kernel,
        out_shape=jax.ShapeDtypeStruct((Mp, Np), jnp.float32),
        grid_spec=pltpu.PrefetchScalarGridSpec(
            num_scalar_prefetch=0,
            grid=grid,
            in_specs=[pl.BlockSpec((tm, tk), lambda i, j, k: (i, k)),
                      pl.BlockSpec((tk, tn), lambda i, j, k: (k, j)),
                      pl.BlockSpec((1, tn), lambda i, j, k: (0, j))],
            out_specs=pl.BlockSpec((tm, tn), lambda i, j, k: (i, j)),
            scratch_shapes=[pltpu.VMEM((tm, tn), jnp.float32)]),
        compiler_params=pltpu.CompilerParams(
            dimension_semantics=("parallel", "parallel", "arbitrary"),
            vmem_limit_bytes=48 * 1024 * 1024),
    )

    def f(a, b, bias):
        if Mp > M or Kp > K:
            a = jnp.pad(a, ((0, Mp - M), (0, Kp - K)))
        if Kp > K or Np > N:
            b = jnp.pad(b, ((0, Kp - K), (0, Np - N)))
        bias2 = jnp.pad(bias.reshape(1, N), ((0, 0), (0, Np - N)))
        out = call(a, b, bias2)
        return out[:M, :N]

    return f


def matmul_bias(a, b, bias):
    """(M,K) @ (K,N) + bias[N], bias fused into the matmul epilogue."""
    return _mm_fn(int(a.shape[0]), int(a.shape[1]), int(b.shape[1]))(a, b, bias)


def _gn_core(x, w, b, G, eps):
    # x: (T, C) channels-last.  Per-group mean/var via one-hot matmuls so the
    # lane (channel) layout is never reshaped.
    T, C = x.shape
    Cg = C // G
    cnt = jnp.float32(T * Cg)
    c_cg = lax.broadcasted_iota(jnp.int32, (C, G), 0)
    g_cg = lax.broadcasted_iota(jnp.int32, (C, G), 1)
    oh_cg = (c_cg // Cg == g_cg).astype(jnp.float32)          # (C, G) chan->group
    g_gc = lax.broadcasted_iota(jnp.int32, (G, C), 0)
    c_gc = lax.broadcasted_iota(jnp.int32, (G, C), 1)
    oh_gc = (c_gc // Cg == g_gc).astype(jnp.float32)          # (G, C) group->chan
    colsum = jnp.sum(x, axis=0, keepdims=True)                # (1, C)
    mean_g = jnp.dot(colsum, oh_cg, preferred_element_type=jnp.float32) / cnt
    mean_c = jnp.dot(mean_g, oh_gc, preferred_element_type=jnp.float32)
    d = x - mean_c
    sqsum = jnp.sum(d * d, axis=0, keepdims=True)
    var_g = jnp.dot(sqsum, oh_cg, preferred_element_type=jnp.float32) / cnt
    var_c = jnp.dot(var_g, oh_gc, preferred_element_type=jnp.float32)
    return d * lax.rsqrt(var_c + eps) * w + b


def _gn_kernel(x_ref, w_ref, b_ref, o_ref, *, G, eps, apply_silu):
    y = _gn_core(x_ref[0], w_ref[...], b_ref[...], G, eps)
    if apply_silu:
        y = y * jax.nn.sigmoid(y)
    o_ref[0] = y


def _gn_film_kernel(x_ref, w_ref, b_ref, sc_ref, sh_ref, o_ref, *, G, eps,
                    apply_silu):
    y = _gn_core(x_ref[0], w_ref[...], b_ref[...], G, eps)
    y = y * (1.0 + sc_ref[...]) + sh_ref[...]                  # FiLM scale/shift
    if apply_silu:
        y = y * jax.nn.sigmoid(y)
    o_ref[0] = y


@functools.lru_cache(maxsize=None)
def _gn_fn(B, T, C, G, apply_silu, has_film):
    kern = functools.partial(_gn_film_kernel if has_film else _gn_kernel,
                             G=G, eps=1e-5, apply_silu=apply_silu)
    in_specs = [pl.BlockSpec((1, T, C), lambda bb: (bb, 0, 0)),
                pl.BlockSpec((1, C), lambda bb: (0, 0)),
                pl.BlockSpec((1, C), lambda bb: (0, 0))]
    if has_film:
        in_specs += [pl.BlockSpec((1, C), lambda bb: (bb, 0)),
                     pl.BlockSpec((1, C), lambda bb: (bb, 0))]
    return pl.pallas_call(
        kern,
        out_shape=jax.ShapeDtypeStruct((B, T, C), jnp.float32),
        grid=(B,),
        in_specs=in_specs,
        out_specs=pl.BlockSpec((1, T, C), lambda bb: (bb, 0, 0)),
        compiler_params=pltpu.CompilerParams(
            dimension_semantics=("parallel",)),
    )


def group_norm(x, w, b, scale=None, shift=None, apply_silu=False, groups=32):
    # x: (B, ..., C) channels-last.  GroupNorm32 semantics (fp32, eps=1e-5).
    sh = x.shape
    B, C = sh[0], sh[-1]
    T = int(math.prod(sh[1:-1])) if len(sh) > 2 else 1
    assert C % groups == 0
    xr = x.reshape(B, T, C)
    has_film = scale is not None
    fn = _gn_fn(B, T, C, groups, bool(apply_silu), has_film)
    wr, br = w.reshape(1, C), b.reshape(1, C)
    out = fn(xr, wr, br, scale, shift) if has_film else fn(xr, wr, br)
    return out.reshape(sh)


def _attn_kernel(q_ref, k_ref, v_ref, o_ref, *, scale):
    q = q_ref[0]                                               # (Hh, T, Cph)
    k = k_ref[0]
    v = v_ref[0]
    w = jnp.einsum('htc,hsc->hts', q, k,
                   preferred_element_type=jnp.float32) * scale  # (Hh, T, T)
    w = jax.nn.softmax(w, axis=-1)
    o = jnp.einsum('hts,hsc->htc', w, v,
                   preferred_element_type=jnp.float32)          # (Hh, T, Cph)
    o_ref[0] = o.astype(o_ref.dtype)


@functools.lru_cache(maxsize=None)
def _attn_fn(B, Hh, T, Cph):
    kern = functools.partial(_attn_kernel, scale=1.0 / math.sqrt(Cph))
    return pl.pallas_call(
        kern,
        out_shape=jax.ShapeDtypeStruct((B, Hh, T, Cph), jnp.float32),
        grid=(B,),
        in_specs=[pl.BlockSpec((1, Hh, T, Cph), lambda bb: (bb, 0, 0, 0))] * 3,
        out_specs=pl.BlockSpec((1, Hh, T, Cph), lambda bb: (bb, 0, 0, 0)),
        compiler_params=pltpu.CompilerParams(
            dimension_semantics=("parallel",)),
    )


# ----------------------------------------------------------------------------
# Conv / linear helpers built on the fused Pallas matmul (NHWC layout)
# ----------------------------------------------------------------------------
def silu(x):
    return x * jax.nn.sigmoid(x)


def conv3x3(x, w, b, stride=1):
    # x: (B, H, W, Cin) NHWC; w: (Cout, Cin, 3, 3) (PyTorch layout); padding=1.
    B, H, W, Cin = x.shape
    Cout = w.shape[0]
    Ho = (H + 2 - 3) // stride + 1
    Wo = (W + 2 - 3) // stride + 1
    xp = jnp.pad(x, ((0, 0), (1, 1), (1, 1), (0, 0)))
    cols = [xp[:, kh:kh + stride * Ho:stride, kw:kw + stride * Wo:stride, :]
            for kh in range(3) for kw in range(3)]
    a = jnp.concatenate(cols, axis=-1)                 # (B,Ho,Wo,9*Cin) (kh,kw,cin)
    wm = jnp.transpose(w, (2, 3, 1, 0)).reshape(9 * Cin, Cout)
    y = matmul_bias(a.reshape(B * Ho * Wo, 9 * Cin), wm, b)
    return y.reshape(B, Ho, Wo, Cout)


def conv1x1(x, w, b):
    # 1x1 conv over the (last) channel dim for any rank.
    Cout = w.shape[0]
    sh = x.shape
    y = matmul_bias(x.reshape(-1, sh[-1]), w.reshape(Cout, -1).T, b)
    return y.reshape(sh[:-1] + (Cout,))


def linear(x, w, b):
    return matmul_bias(x, w.T, b)


# ----------------------------------------------------------------------------
# UNet building blocks (improved-diffusion UNetModel semantics)
# ----------------------------------------------------------------------------
def timestep_embedding(t, dim, max_period=10000):
    half = dim // 2
    freqs = jnp.exp(-math.log(max_period) *
                    jnp.arange(half, dtype=jnp.float32) / half)
    args = t[:, None].astype(jnp.float32) * freqs[None]
    return jnp.concatenate([jnp.cos(args), jnp.sin(args)], axis=-1)


def res_block(h_in, emb, p):
    # use_scale_shift_norm=True, dropout=0 (identity)
    h = group_norm(h_in, p['in_norm_w'], p['in_norm_b'], apply_silu=True)
    h = conv3x3(h, p['in_conv']['w'], p['in_conv']['b'])
    emb_out = linear(silu(emb), p['emb']['w'], p['emb']['b'])
    scale, shift = jnp.split(emb_out, 2, axis=1)
    h = group_norm(h, p['out_norm_w'], p['out_norm_b'],
                   scale=scale, shift=shift, apply_silu=True)
    h = conv3x3(h, p['out_conv']['w'], p['out_conv']['b'])
    skip = conv1x1(h_in, p['skip']['w'], p['skip']['b']) if 'skip' in p else h_in
    return skip + h


def attention_block(x, p, num_heads):
    B, H, W, C = x.shape
    T = H * W
    Cph = C // num_heads
    xr = x.reshape(B, T, C)
    h = group_norm(xr, p['norm_w'], p['norm_b'], apply_silu=False)
    qkv = conv1x1(h, p['qkv']['w'], p['qkv']['b'])             # (B, T, 3C)
    # torch: qkv.reshape(B*heads, 3*Cph, T) then split -> per-head [q|k|v].
    qkv = qkv.reshape(B, T, num_heads, 3, Cph)
    q = jnp.transpose(qkv[:, :, :, 0, :], (0, 2, 1, 3))        # (B, Hh, T, Cph)
    k = jnp.transpose(qkv[:, :, :, 1, :], (0, 2, 1, 3))
    v = jnp.transpose(qkv[:, :, :, 2, :], (0, 2, 1, 3))
    a = _attn_fn(B, num_heads, T, Cph)(q, k, v)                # (B, Hh, T, Cph)
    a = jnp.transpose(a, (0, 2, 1, 3)).reshape(B, T, C)
    h = conv1x1(a, p['proj']['w'], p['proj']['b'])
    return (xr + h).reshape(B, H, W, C)


def apply_block(kinds, plist, h, emb, num_heads):
    for kind, p in zip(kinds, plist):
        if kind == 'conv':
            h = conv3x3(h, p['w'], p['b'])
        elif kind == 'res':
            h = res_block(h, emb, p)
        elif kind == 'attn':
            h = attention_block(h, p, num_heads)
        elif kind == 'down':
            h = conv3x3(h, p['w'], p['b'], stride=2)
        elif kind == 'up':
            h = jnp.repeat(jnp.repeat(h, 2, axis=1), 2, axis=2)  # nearest x2
            h = conv3x3(h, p['w'], p['b'])
    return h


def unet_forward(arch, params, x, t, model_channels=128, num_heads=4):
    h = jnp.transpose(x, (0, 2, 3, 1)).astype(jnp.float32)     # NCHW -> NHWC
    emb = timestep_embedding(t, model_channels)
    emb = linear(emb, params['time']['l1']['w'], params['time']['l1']['b'])
    emb = silu(emb)
    emb = linear(emb, params['time']['l2']['w'], params['time']['l2']['b'])
    hs = []
    for kinds, plist in zip(arch['input_blocks'], params['input_blocks']):
        h = apply_block(kinds, plist, h, emb, num_heads)
        hs.append(h)
    h = apply_block(arch['middle_block'], params['middle_block'], h, emb,
                    num_heads)
    for kinds, plist in zip(arch['output_blocks'], params['output_blocks']):
        h = jnp.concatenate([h, hs.pop()], axis=-1)            # channel concat
        h = apply_block(kinds, plist, h, emb, num_heads)
    h = group_norm(h, params['out']['norm_w'], params['out']['norm_b'],
                   apply_silu=True)
    h = conv3x3(h, params['out']['conv']['w'], params['out']['conv']['b'])
    return jnp.transpose(h, (0, 3, 1, 2))                      # NHWC -> NCHW


def make_forward(arch, model_channels=128, num_heads=4):
    # Single top-level jit over the whole UNet: all glue fuses around the
    # Pallas custom calls, no per-op eager dispatch.
    def fwd(params, t, x, condition=None):
        # MyModule.forward(t, x, condition): num_classes=None -> condition unused.
        assert condition is None
        return unet_forward(arch, params, x, t,
                            model_channels=model_channels, num_heads=num_heads)
    return jax.jit(fwd)


# ----------------------------------------------------------------------------
# Deterministic parameter init (shapes mirror UNetModel.__init__)
# ----------------------------------------------------------------------------
class Rng:
    def __init__(self, key):
        self.key = key

    def next(self):
        self.key, sub = jax.random.split(self.key)
        return sub


def conv_params(rng, cout, cin, k, scale=1.0):
    std = scale / math.sqrt(cin * k * k)
    return {'w': jax.random.normal(rng.next(), (cout, cin, k, k), jnp.float32) * std,
            'b': jnp.zeros((cout,), jnp.float32)}


def linear_params(rng, cout, cin, scale=1.0):
    std = scale / math.sqrt(cin)
    return {'w': jax.random.normal(rng.next(), (cout, cin), jnp.float32) * std,
            'b': jnp.zeros((cout,), jnp.float32)}


def init_unet_params(key, in_channels=3, model_channels=128, out_channels=3,
                     num_res_blocks=3, attention_resolutions=(4, 8),
                     channel_mult=(1, 2, 3, 4)):
    rng = Rng(key)
    time_dim = model_channels * 4

    def res_p(cin, cout):
        p = {'in_norm_w': jnp.ones((cin,), jnp.float32),
             'in_norm_b': jnp.zeros((cin,), jnp.float32),
             'in_conv': conv_params(rng, cout, cin, 3),
             'emb': linear_params(rng, 2 * cout, time_dim),
             'out_norm_w': jnp.ones((cout,), jnp.float32),
             'out_norm_b': jnp.zeros((cout,), jnp.float32),
             # zero_module() in the reference; small random init used instead
             # so the output path is non-trivially exercised.
             'out_conv': conv_params(rng, cout, cout, 3, scale=0.1)}
        if cin != cout:
            p['skip'] = conv_params(rng, cout, cin, 1)
        return p

    def attn_p(ch):
        return {'norm_w': jnp.ones((ch,), jnp.float32),
                'norm_b': jnp.zeros((ch,), jnp.float32),
                'qkv': conv_params(rng, 3 * ch, ch, 1),
                'proj': conv_params(rng, ch, ch, 1, scale=0.1)}  # zero_module in ref

    params = {'time': {'l1': linear_params(rng, time_dim, model_channels),
                       'l2': linear_params(rng, time_dim, time_dim)}}

    input_blocks = [[('conv', conv_params(rng, model_channels, in_channels, 3))]]
    input_block_chans = [model_channels]
    ch, ds = model_channels, 1
    for level, mult in enumerate(channel_mult):
        for _ in range(num_res_blocks):
            layers = [('res', res_p(ch, mult * model_channels))]
            ch = mult * model_channels
            if ds in attention_resolutions:
                layers.append(('attn', attn_p(ch)))
            input_blocks.append(layers)
            input_block_chans.append(ch)
        if level != len(channel_mult) - 1:
            input_blocks.append([('down', conv_params(rng, ch, ch, 3))])
            input_block_chans.append(ch)
            ds *= 2

    middle_block = [('res', res_p(ch, ch)), ('attn', attn_p(ch)),
                    ('res', res_p(ch, ch))]

    output_blocks = []
    for level, mult in list(enumerate(channel_mult))[::-1]:
        for i in range(num_res_blocks + 1):
            ich = input_block_chans.pop()
            layers = [('res', res_p(ch + ich, model_channels * mult))]
            ch = model_channels * mult
            if ds in attention_resolutions:
                layers.append(('attn', attn_p(ch)))
            if level and i == num_res_blocks:
                layers.append(('up', conv_params(rng, ch, ch, 3)))
                ds //= 2
            output_blocks.append(layers)

    def split(blocks):
        kinds = tuple(tuple(k for k, _ in blk) for blk in blocks)
        ps = [[p for _, p in blk] for blk in blocks]
        return kinds, ps

    arch = {}
    arch['input_blocks'], params['input_blocks'] = split(input_blocks)
    arch['middle_block'] = tuple(k for k, _ in middle_block)
    params['middle_block'] = [p for _, p in middle_block]
    arch['output_blocks'], params['output_blocks'] = split(output_blocks)

    params['out'] = {'norm_w': jnp.ones((ch,), jnp.float32),
                     'norm_b': jnp.zeros((ch,), jnp.float32),
                     'conv': conv_params(rng, out_channels, ch, 3, scale=0.1)}
    return arch, params


# ----------------------------------------------------------------------------
if __name__ == "__main__":
    root = jax.random.PRNGKey(0)
    pkey, xkey, tkey, skey = jax.random.split(root, 4)

    # sanity check: fused bias matmul kernel vs XLA
    a = jax.random.normal(skey, (37, 65), jnp.float32)
    bm = jax.random.normal(jax.random.fold_in(skey, 1), (65, 19), jnp.float32)
    bb = jax.random.normal(jax.random.fold_in(skey, 2), (19,), jnp.float32)
    assert jnp.allclose(matmul_bias(a, bm, bb), a @ bm + bb[None, :],
                        atol=1e-3, rtol=1e-3)

    # sanity check: GroupNorm kernel vs plain-JAX reference
    gB, gT, gC, gG = 2, 16, 128, 32
    gx = jax.random.normal(jax.random.fold_in(skey, 3), (gB, gT, gC), jnp.float32)
    gw = jax.random.normal(jax.random.fold_in(skey, 4), (gC,), jnp.float32)
    gb = jax.random.normal(jax.random.fold_in(skey, 5), (gC,), jnp.float32)
    got = group_norm(gx, gw, gb, apply_silu=False, groups=gG)
    xg = gx.reshape(gB, gT, gG, gC // gG)
    m = xg.mean(axis=(1, 3), keepdims=True)
    v = ((xg - m) ** 2).mean(axis=(1, 3), keepdims=True)
    ref = ((xg - m) / jnp.sqrt(v + 1e-5)).reshape(gB, gT, gC) * gw + gb
    assert jnp.allclose(got, ref, atol=1e-3, rtol=1e-3)

    arch, params = init_unet_params(pkey)
    forward = make_forward(arch)

    # small shapes: batch=2, 3 channels, 16x16 spatial (attention kicks in at
    # downsample factors 4 and 8, i.e. 4x4 and 2x2 feature maps).
    x = jax.random.normal(xkey, (2, 3, 16, 16), jnp.float32)   # NCHW input
    t = jax.random.uniform(tkey, (2,), jnp.float32, 0.0, 1000.0)

    y = forward(params, t, x)
    y = jax.block_until_ready(y)

    assert y.shape == (2, 3, 16, 16) and y.dtype == jnp.float32
    assert bool(jnp.all(jnp.isfinite(y)))
    print("KERNEL_OK")
</pallas_src>

<mosaic_0001>
module attributes {stable_mosaic.version = 11 : i64} {
  func.func @_mm_bias_kernel(%arg0: i32, %arg1: i32, %arg2: i32, %arg3: memref<40x128xf32, #tpu.memory_space<vmem>>, %arg4: memref<128x128xf32, #tpu.memory_space<vmem>>, %arg5: memref<1x128xf32, #tpu.memory_space<vmem>>, %arg6: memref<40x128xf32, #tpu.memory_space<vmem>>, %arg7: memref<40x128xf32, #tpu.memory_space<vmem>>) attributes {dimension_semantics = [#tpu.dimension_semantics<parallel>, #tpu.dimension_semantics<parallel>, #tpu.dimension_semantics<arbitrary>], iteration_bounds = array<i64: 1, 1, 1>, scalar_prefetch = 0 : i64, scratch_operands = 1 : i64, tpu.core_type = #tpu.core_type<tc>, window_params = [{transform_indices = @transform_0, window_bounds = array<i64: 40, 128>}, {transform_indices = @transform_1, window_bounds = array<i64: 128, 128>}, {transform_indices = @transform_2, window_bounds = array<i64: 1, 128>}, {transform_indices = @transform_3, window_bounds = array<i64: 40, 128>}]} {
    %c0_i32 = arith.constant 0 : i32
    %0 = arith.cmpi eq, %arg2, %c0_i32 : i32
    %1 = arith.extui %0 : i1 to i32
    %c0_i32_0 = arith.constant 0 : i32
    %2 = arith.cmpi ne, %1, %c0_i32_0 : i32
    scf.if %2 {
      %cst_10 = arith.constant 0.000000e+00 : f32
      %12 = vector.broadcast %cst_10 : f32 to vector<40x128xf32>
      %c0_11 = arith.constant 0 : index
      %c0_12 = arith.constant 0 : index
      %13 = vector.load %arg7[%c0_11, %c0_12] : memref<40x128xf32, #tpu.memory_space<vmem>>, vector<40x128xf32>
      tpu.vector_store %arg7[%c0_11, %c0_12], %12 {strides = array<i32>} : memref<40x128xf32, #tpu.memory_space<vmem>>, vector<40x128xf32>,
    } else {
    }
    %c0 = arith.constant 0 : index
    %c0_1 = arith.constant 0 : index
    %3 = vector.load %arg7[%c0, %c0_1] : memref<40x128xf32, #tpu.memory_space<vmem>>, vector<40x128xf32>
    %c0_2 = arith.constant 0 : index
    %c0_3 = arith.constant 0 : index
    %4 = vector.load %arg3[%c0_2, %c0_3] : memref<40x128xf32, #tpu.memory_space<vmem>>, vector<40x128xf32>
    %c0_4 = arith.constant 0 : index
    %c0_5 = arith.constant 0 : index
    %5 = vector.load %arg4[%c0_4, %c0_5] : memref<128x128xf32, #tpu.memory_space<vmem>>, vector<128x128xf32>
    %cst = arith.constant dense<0.000000e+00> : vector<40x128xf32>
    %6 = tpu.matmul %4, %5, %cst {dimension_numbers = #tpu.dot_dimension_numbers<[1], [0], [0], [1], [0, 0, 1, 1], [], []>} : vector<40x128xf32>, vector<128x128xf32>, vector<40x128xf32> -> vector<40x128xf32>
    %7 = arith.addf %3, %6 : vector<40x128xf32>
    %c0_6 = arith.constant 0 : index
    %c0_7 = arith.constant 0 : index
    %8 = vector.load %arg7[%c0_6, %c0_7] : memref<40x128xf32, #tpu.memory_space<vmem>>, vector<40x128xf32>
    tpu.vector_store %arg7[%c0_6, %c0_7], %7 {strides = array<i32>} : memref<40x128xf32, #tpu.memory_space<vmem>>, vector<40x128xf32>,
    %c0_i32_8 = arith.constant 0 : i32
    %9 = arith.cmpi eq, %arg2, %c0_i32_8 : i32
    %10 = arith.extui %9 : i1 to i32
    %c0_i32_9 = arith.constant 0 : i32
    %11 = arith.cmpi ne, %10, %c0_i32_9 : i32
    scf.if %11 {
      %c0_10 = arith.constant 0 : index
      %c0_11 = arith.constant 0 : index
      %12 = vector.load %arg7[%c0_10, %c0_11] : memref<40x128xf32, #tpu.memory_space<vmem>>, vector<40x128xf32>
      %c0_12 = arith.constant 0 : index
      %c0_13 = arith.constant 0 : index
      %13 = vector.load %arg5[%c0_12, %c0_13] : memref<1x128xf32, #tpu.memory_space<vmem>>, vector<1x128xf32>
      %14 = vector.broadcast %13 : vector<1x128xf32> to vector<40x128xf32>
      %15 = arith.addf %12, %14 : vector<40x128xf32>
      %c0_14 = arith.constant 0 : index
      %c0_15 = arith.constant 0 : index
      %16 = vector.load %arg6[%c0_14, %c0_15] : memref<40x128xf32, #tpu.memory_space<vmem>>, vector<40x128xf32>
      tpu.vector_store %arg6[%c0_14, %c0_15], %15 {strides = array<i32>} : memref<40x128xf32, #tpu.memory_space<vmem>>, vector<40x128xf32>,
    } else {
    }
    return
  }
  func.func @transform_0(%arg0: i32, %arg1: i32, %arg2: i32) -> (i32, i32) {
    %c0_i32 = arith.constant 0 : i32
    return %arg0, %arg2 : i32, i32
  }
  func.func @transform_1(%arg0: i32, %arg1: i32, %arg2: i32) -> (i32, i32) {
    %c0_i32 = arith.constant 0 : i32
    return %arg2, %arg1 : i32, i32
  }
  func.func @transform_2(%arg0: i32, %arg1: i32, %arg2: i32) -> (i32, i32) {
    %c0_i32 = arith.constant 0 : i32
    %c0_i32_0 = arith.constant 0 : i32
    return %c0_i32, %arg1 : i32, i32
  }
  func.func @transform_3(%arg0: i32, %arg1: i32, %arg2: i32) -> (i32, i32) {
    %c0_i32 = arith.constant 0 : i32
    return %arg0, %arg1 : i32, i32
  }
}

</mosaic_0001>

<llo_original>
// kernel: tpu_custom_call.1
$region0: #{tpu_custom_call.1}
  #allocation0 [shape = 'u32[]', space=smem, size = 0x4, offset = 0x4, fixed_abs, tag = 'smem constant byte address 0x4 - core index']
  #allocation1 [shape = 'u32[144,128]{1,0:T(1,128)}', space=vmem, size = 0x12000, scoped, tag = 'internal scratch']
  #allocation2 [shape = 'f32[40,128]{1,0:T(8,128)}', space=vmem, size = 0x5000, scoped, tag = 'scratch operand']
  %s0 = inlined_call_operand.hbm [shape: f32[40,128], index: 0, kind: input, shape index: {}]
  %s1 = inlined_call_operand.hbm [shape: f32[128,128], index: 1, kind: input, shape index: {}]
  %s2 = inlined_call_operand.vmem [shape: f32[1,128], index: 2, kind: input, shape index: {}]
  %s3 = inlined_call_operand.hbm [shape: f32[40,128], index: 3, kind: output, shape index: {}]
  %s4 = sld [smem:[#allocation0]]
  $region38: #{tpu_custom_call.1} parent=0
    _
  %s6 = ssub.s32 1, %s4
  %s7 = scalar_select 0, %s6, %s4
  $region1: #{tpu_custom_call.1} parent=0
    #allocation3 [shape = 'u8[20480]{0}', space=vmem, size = 0x5000, scoped, tag = 'input window, operand 0, single buffered']
    #allocation4 [shape = 's32[1]{0}', space=sflag, size = 0x4, scoped, tag = 'scoped memory for tpu_custom_call.1']
    #allocation5 [shape = 's32[1]{0}', space=sflag, size = 0x4, scoped, tag = 'scoped memory for tpu_custom_call.1']
    #allocation6 [shape = 'u8[65536]{0}', space=vmem, size = 0x10000, scoped, tag = 'input window, operand 1, single buffered']
    #allocation7 [shape = 's32[1]{0}', space=sflag, size = 0x4, scoped, tag = 'scoped memory for tpu_custom_call.1']
    #allocation8 [shape = 'u8[20480]{0}', space=vmem, size = 0x5000, scoped, tag = 'output window, operand 0, single buffered']
    %8 = vsyncpa [#allocation4], 0
    %9 = vsyncpa [#allocation7], 0
    %10 = vsyncpa [#allocation5], 0
    // Predicated region
    $region2: #{tpu_custom_call.1} parent=1 // pred_check
      _
    $region3: #{tpu_custom_call.1} parent=1 // pred_check_branch
      %12 = sbr.rel (0) target = $region5
    $region4: #{tpu_custom_call.1} parent=1 // pred_region
      %s14 = ssub.s32 640, 640
      %15 = vsyncadd [#allocation4], %s14
      %s16 = sshll.u32 [#allocation3], 4
      %s17 = int_to_ptr.vmem [resolvable:$true] %s16
      %22 = dma.hbm_to_vmem [thread:$0]  %s0, 640, %s17, [#allocation4], 128, 128, 8
    $region5: #{tpu_custom_call.1} parent=1 // pred_fallthru
      _
    // Predicated region
    $region6: #{tpu_custom_call.1} parent=1 // pred_check
      _
    $region7: #{tpu_custom_call.1} parent=1 // pred_check_branch
      %24 = sbr.rel (0) target = $region9
    $region8: #{tpu_custom_call.1} parent=1 // pred_region
      %s26 = ssub.s32 2048, 2048
      %27 = vsyncadd [#allocation7], %s26
      %s28 = sshll.u32 [#allocation6], 4
      %s29 = int_to_ptr.vmem [resolvable:$true] %s28
      %34 = dma.hbm_to_vmem [thread:$0]  %s1, 2048, %s29, [#allocation7], 128, 128, 8
    $region9: #{tpu_custom_call.1} parent=1 // pred_fallthru
      _
    // Predicated region
    $region10: #{tpu_custom_call.1} parent=1 // pred_check
      _
    $region11: #{tpu_custom_call.1} parent=1 // pred_check_branch
      %36 = sbr.rel (0) target = $region13
    $region12: #{tpu_custom_call.1} parent=1 // pred_region
      _
    $region13: #{tpu_custom_call.1} parent=1 // pred_fallthru
      _
    // Predicated region
    $region14: #{tpu_custom_call.1} parent=1 // pred_check
      _
    $region15: #{tpu_custom_call.1} parent=1 // pred_check_branch
      %38 = sbr.rel (0) target = $region17
    $region16: #{tpu_custom_call.1} parent=1 // pred_region
      %39 = dma.done [#allocation4], 640
    $region17: #{tpu_custom_call.1} parent=1 // pred_fallthru
      _
    // Predicated region
    $region18: #{tpu_custom_call.1} parent=1 // pred_check
      _
    $region19: #{tpu_custom_call.1} parent=1 // pred_check_branch
      %41 = sbr.rel (0) target = $region21
    $region20: #{tpu_custom_call.1} parent=1 // pred_region
      %42 = dma.done [#allocation7], 2048
    $region21: #{tpu_custom_call.1} parent=1 // pred_fallthru
      _
    %p43 = scmp.eq.s32.totalorder 0, 0
    // Predicated region
    $region22: #{tpu_custom_call.1} parent=1 // pred_check
      %p44 = pneg %p43
    $region23: #{tpu_custom_call.1} parent=1 // pred_check_branch
      %46 = sbr.rel (%p44) target = $region25
    $region24: #{tpu_custom_call.1} parent=1 // pred_region
      %47 = vst [vmem:[#allocation2] sm:$0xff] 0.0
      %48 = vst [vmem:[#allocation2 + $0x8] sm:$0xff] 0.0
      %49 = vst [vmem:[#allocation2 + $0x10] sm:$0xff] 0.0
      %50 = vst [vmem:[#allocation2 + $0x18] sm:$0xff] 0.0
      %51 = vst [vmem:[#allocation2 + $0x20] sm:$0xff] 0.0
    $region25: #{tpu_custom_call.1} parent=1 // pred_fallthru
      _
    %v52 = vld [vmem:[#allocation2] sm:$0xff]
    %v53 = vld [vmem:[#allocation2 + $0x8] sm:$0xff]
    %v54 = vld [vmem:[#allocation2 + $0x10] sm:$0xff]
    %v55 = vld [vmem:[#allocation2 + $0x18] sm:$0xff]
    %v56 = vld [vmem:[#allocation2 + $0x20] sm:$0xff]
    %v57 = vld [vmem:[#allocation3] sm:$0xff]
    %v58 = vld [vmem:[#allocation3 + $0x8] sm:$0xff]
    %v59 = vld [vmem:[#allocation3 + $0x10] sm:$0xff]
    %v60 = vld [vmem:[#allocation3 + $0x18] sm:$0xff]
    %v61 = vld [vmem:[#allocation3 + $0x20] sm:$0xff]
    %v62 = vld [vmem:[#allocation6] sm:$0xff]
    %v63 = vld [vmem:[#allocation6 + $0x8] sm:$0xff]
    %v64 = vld [vmem:[#allocation6 + $0x10] sm:$0xff]
    %v65 = vld [vmem:[#allocation6 + $0x18] sm:$0xff]
    %v66 = vld [vmem:[#allocation6 + $0x20] sm:$0xff]
    %v67 = vld [vmem:[#allocation6 + $0x28] sm:$0xff]
    %v68 = vld [vmem:[#allocation6 + $0x30] sm:$0xff]
    %v69 = vld [vmem:[#allocation6 + $0x38] sm:$0xff]
    %v70 = vld [vmem:[#allocation6 + $0x40] sm:$0xff]
    %v71 = vld [vmem:[#allocation6 + $0x48] sm:$0xff]
    %v72 = vld [vmem:[#allocation6 + $0x50] sm:$0xff]
    %v73 = vld [vmem:[#allocation6 + $0x58] sm:$0xff]
    %v74 = vld [vmem:[#allocation6 + $0x60] sm:$0xff]
    %v75 = vld [vmem:[#allocation6 + $0x68] sm:$0xff]
    %v76 = vld [vmem:[#allocation6 + $0x70] sm:$0xff]
    %v77 = vld [vmem:[#allocation6 + $0x78] sm:$0xff]
    %78 = vmatprep.subr.mxu0 0.0
    %79 = vmatpush1.msra.mxu0 %v62
    %80 = vmatprep.subr.mxu0 0.0
    %81 = vmatpush1.msra.mxu0 %v63
    %82 = vmatprep.subr.mxu0 0.0
    %83 = vmatpush1.msra.mxu0 %v64
    %84 = vmatprep.subr.mxu0 0.0
    %85 = vmatpush1.msra.mxu0 %v65
    %86 = vmatprep.subr.mxu0 0.0
    %87 = vmatpush1.msra.mxu0 %v66
    %88 = vmatprep.subr.mxu0 0.0
    %89 = vmatpush1.msra.mxu0 %v67
    %90 = vmatprep.subr.mxu0 0.0
    %91 = vmatpush1.msra.mxu0 %v68
    %92 = vmatprep.subr.mxu0 0.0
    %93 = vmatpush1.msra.mxu0 %v69
    %94 = vmatprep.subr.mxu0 0.0
    %95 = vmatpush1.msra.mxu0 %v70
    %96 = vmatprep.subr.mxu0 0.0
    %97 = vmatpush1.msra.mxu0 %v71
    %98 = vmatprep.subr.mxu0 0.0
    %99 = vmatpush1.msra.mxu0 %v72
    %100 = vmatprep.subr.mxu0 0.0
    %101 = vmatpush1.msra.mxu0 %v73
    %102 = vmatprep.subr.mxu0 0.0
    %103 = vmatpush1.msra.mxu0 %v74
    %104 = vmatprep.subr.mxu0 0.0
    %105 = vmatpush1.msra.mxu0 %v75
    %106 = vmatprep.subr.mxu0 0.0
    %107 = vmatpush1.msra.mxu0 %v76
    %108 = vmatprep.subr.mxu0 0.0
    %109 = vmatpush1.msra.mxu0 %v77
    %110 = vmatprep.subr.mxu0 0.0
    %111 = vmatpush1.msra.mxu0 0.0
    %112 = vmatprep.subr.mxu0 0.0
    %113 = vmatpush1.msra.mxu0 0.0
    %114 = vmatprep.subr.mxu0 0.0
    %115 = vmatpush1.msra.mxu0 0.0
    %116 = vmatprep.subr.mxu0 0.0
    %117 = vmatpush1.msra.mxu0 0.0
    %118 = vmatprep.subr.mxu0 0.0
    %119 = vmatpush1.msra.mxu0 0.0
    %120 = vmatprep.subr.mxu0 0.0
    %121 = vmatpush1.msra.mxu0 0.0
    %122 = vmatprep.subr.mxu0 0.0
    %123 = vmatpush1.msra.mxu0 0.0
    %124 = vmatprep.subr.mxu0 0.0
    %125 = vmatpush1.msra.mxu0 0.0
    %126 = vmatprep.subr.mxu0 0.0
    %127 = vmatpush1.msra.mxu0 0.0
    %128 = vmatprep.subr.mxu0 0.0
    %129 = vmatpush1.msra.mxu0 0.0
    %130 = vmatprep.subr.mxu0 0.0
    %131 = vmatpush1.msra.mxu0 0.0
    %132 = vmatprep.subr.mxu0 0.0
    %133 = vmatpush1.msra.mxu0 0.0
    %134 = vmatprep.subr.mxu0 0.0
    %135 = vmatpush1.msra.mxu0 0.0
    %136 = vmatprep.subr.mxu0 0.0
    %137 = vmatpush1.msra.mxu0 0.0
    %138 = vmatprep.subr.mxu0 0.0
    %139 = vmatpush1.msra.mxu0 0.0
    %140 = vmatprep.subr.mxu0 0.0
    %141 = vmatpush1.msra.mxu0 0.0
    %142 = vmatprep.mubr.f32.mxu0 0.0
    %143 = vmatmul.mubr.f32.gmra.mrb[0].mxu0 %v57
    %v144 = vpop.f32.mrb[0].mxu0
    %v145 = vadd.f32 0.0, %v144
    %v146 = vpop.f32.mrb[0].mxu0
    %147 = vmatprep.mubr.f32.mxu0 0.0
    %148 = vmatmul.mubr.f32.gmra.mrb[0].mxu0 %v58
    %v149 = vpop.f32.mrb[0].mxu0
    %v150 = vadd.f32 0.0, %v149
    %v151 = vpop.f32.mrb[0].mxu0
    %152 = vmatprep.mubr.f32.mxu0 0.0
    %153 = vmatmul.mubr.f32.gmra.mrb[0].mxu0 %v59
    %v154 = vpop.f32.mrb[0].mxu0
    %v155 = vadd.f32 0.0, %v154
    %v156 = vpop.f32.mrb[0].mxu0
    %157 = vmatprep.mubr.f32.mxu0 0.0
    %158 = vmatmul.mubr.f32.gmra.mrb[0].mxu0 %v60
    %v159 = vpop.f32.mrb[0].mxu0
    %v160 = vadd.f32 0.0, %v159
    %v161 = vpop.f32.mrb[0].mxu0
    %162 = vmatprep.mubr.f32.mxu0 0.0
    %163 = vmatmul.mubr.f32.gmra.mrb[0].mxu0 %v61
    %v164 = vpop.f32.mrb[0].mxu0
    %v165 = vadd.f32 0.0, %v164
    %v166 = vpop.f32.mrb[0].mxu0
    %167 = vdwg.mxu0
    %v168 = vadd.f32 %v52, %v145
    %v169 = vadd.f32 %v53, %v150
    %v170 = vadd.f32 %v54, %v155
    %v171 = vadd.f32 %v55, %v160
    %v172 = vadd.f32 %v56, %v165
    %173 = vst [vmem:[#allocation2] sm:$0xff] %v168
    %174 = vst [vmem:[#allocation2 + $0x8] sm:$0xff] %v169
    %175 = vst [vmem:[#allocation2 + $0x10] sm:$0xff] %v170
    %176 = vst [vmem:[#allocation2 + $0x18] sm:$0xff] %v171
    %177 = vst [vmem:[#allocation2 + $0x20] sm:$0xff] %v172
    // Predicated region
    $region26: #{tpu_custom_call.1} parent=1 // pred_check
      %p178 = pneg %p43
    $region27: #{tpu_custom_call.1} parent=1 // pred_check_branch
      %180 = sbr.rel (%p178) target = $region29
    $region28: #{tpu_custom_call.1} parent=1 // pred_region
      %v181 = vld [vmem:[#allocation2] sm:$0xff]
      %v182 = vld [vmem:[#allocation2 + $0x8] sm:$0xff]
      %v183 = vld [vmem:[#allocation2 + $0x10] sm:$0xff]
      %v184 = vld [vmem:[#allocation2 + $0x18] sm:$0xff]
      %v185 = vld [vmem:[#allocation2 + $0x20] sm:$0xff]
      %v186 = vld [vmem:[%s2] sm:$0x1]
      %v188 = vlaneseq
      %v189 = vshrl.u32 %v188, 7
      %v190 = vsub.s32 0, %v189
      %v191 = vrot.slane %v186, %v190
      %v193 = vadd.f32 %v181, %v191
      %v194 = vadd.f32 %v182, %v191
      %v195 = vadd.f32 %v183, %v191
      %v196 = vadd.f32 %v184, %v191
      %v197 = vadd.f32 %v185, %v191
      %198 = vst [vmem:[#allocation8] sm:$0xff] %v193
      %199 = vst [vmem:[#allocation8 + $0x8] sm:$0xff] %v194
      %200 = vst [vmem:[#allocation8 + $0x10] sm:$0xff] %v195
      %201 = vst [vmem:[#allocation8 + $0x18] sm:$0xff] %v196
      %202 = vst [vmem:[#allocation8 + $0x20] sm:$0xff] %v197
    $region29: #{tpu_custom_call.1} parent=1 // pred_fallthru
      _
    // Predicated region
    $region30: #{tpu_custom_call.1} parent=1 // pred_check
      _
    $region31: #{tpu_custom_call.1} parent=1 // pred_check_branch
      %204 = sbr.rel (0) target = $region33
    $region32: #{tpu_custom_call.1} parent=1 // pred_region
      %s206 = ssub.s32 640, 640
      %207 = vsyncadd [#allocation5], %s206
      %s208 = sshll.u32 [#allocation8], 4
      %s209 = int_to_ptr.vmem [resolvable:$true] %s208
      %214 = dma.vmem_to_hbm [thread:$0]  %s209, 640, %s3, [#allocation5], 128, 128, 8
    $region33: #{tpu_custom_call.1} parent=1 // pred_fallthru
      _
    // Predicated region
    $region34: #{tpu_custom_call.1} parent=1 // pred_check
      _
    $region35: #{tpu_custom_call.1} parent=1 // pred_check_branch
      %216 = sbr.rel (0) target = $region37
    $region36: #{tpu_custom_call.1} parent=1 // pred_region
      %217 = dma.done [#allocation5], 640
    $region37: #{tpu_custom_call.1} parent=1 // pred_fallthru
      _
    %218 = vsyncpa [#allocation4], 1
    %219 = vsyncpa [#allocation7], 1
    %220 = vsyncpa [#allocation5], 1

</llo_original>
